<compile_context>
chip_gen: v7x
topology: tpu7x:2x2x1
jax: 0.10.0
libtpu: 0.0.40
codegen_flags: <defaults>
</compile_context>

<pallas_src>
import functools

import jax
import jax.numpy as jnp
from jax.experimental import pallas as pl
from jax.experimental.pallas import tpu as pltpu


def _round_up(x, m):
    return (x + m - 1) // m * m


def _vmem_capacity_bytes():
    """Physical VMEM per core; conservative fallback (v7x) if query fails."""
    try:
        cap = getattr(pltpu.get_tpu_info(), "vmem_capacity_bytes", None)
        if cap:
            return int(cap)
    except Exception:
        pass
    return 64 * 2**20


def _buffered_spec(block_shape, index_map, buffers):
    """BlockSpec with explicit pipeline depth; falls back to default (2)."""
    try:
        return pl.BlockSpec(block_shape, index_map,
                            pipeline_mode=pl.Buffered(buffers))
    except Exception:
        return pl.BlockSpec(block_shape, index_map)


# --------------------------------------------------------------------------
# Kernels
# --------------------------------------------------------------------------
def _fused_kernel(num_layers, HP, D,
                  x_ref, w_ref, b_ref, w_fc_ref, b_fc_ref, out_ref):
    """Single grid step; all weights VMEM-resident; layers walked in-register.

    x_ref    : (Bpad, D)              bf16  zero-padded input
    w_ref    : (L, D, 3*HP)           bf16  gate blocks [i | g | o], lane padded
    b_ref    : (L, 1, 3*HP)           f32   fused bias (b_ih + b_hh), gates i,g,o
    w_fc_ref : (HP, CP)               bf16  fc weight (transposed, padded)
    b_fc_ref : (1, CP)                f32   fc bias (padded)
    out_ref  : (Bpad, CP)             f32
    """
    def gate_act(gates):
        i_g = jax.nn.sigmoid(gates[:, 0:HP])
        g_g = jnp.tanh(gates[:, HP:2 * HP])
        o_g = jax.nn.sigmoid(gates[:, 2 * HP:3 * HP])
        # c = i*g (f*c0 == 0); h = o*tanh(c). Padded lanes come out exactly 0.
        return (o_g * jnp.tanh(i_g * g_g)).astype(jnp.bfloat16)

    # Layer 0: contraction over the (padded) input dim D.
    gates0 = jnp.dot(x_ref[...], w_ref[0],
                     preferred_element_type=jnp.float32) + b_ref[0]
    h = gate_act(gates0)                                     # (Bpad, HP) bf16

    # Layers 1..L-1: contraction over HP, h carried as a loop value (vregs).
    def layer_step(l, h):
        w_l = w_ref[l]                                       # (D, 3*HP) bf16
        if HP < D:
            w_l = w_l[:HP, :]        # rows >= HP are all-zero for layers >= 1
        gates = jnp.dot(h, w_l, preferred_element_type=jnp.float32) + b_ref[l]
        return gate_act(gates)

    h = jax.lax.fori_loop(1, num_layers, layer_step, h, unroll=True)

    out_ref[...] = (jnp.dot(h, w_fc_ref[...],
                            preferred_element_type=jnp.float32)
                    + b_fc_ref[...])


def _layered_kernel(num_layers, HP, D,
                    x_ref, w_ref, b_ref, w_fc_ref, b_fc_ref, out_ref, h_ref):
    """One grid step == one LSTM layer (large-hidden fallback path).

    x_ref    : (Bpad, D)      bf16  whole-array VMEM resident
    w_ref    : (1, D, 3*HP)   bf16  pipelined layer weights
    b_ref    : (1, 1, 3*HP)   f32   pipelined layer bias
    w_fc_ref : (HP, CP)       bf16  whole-array VMEM resident
    b_fc_ref : (1, CP)        f32   whole-array VMEM resident
    out_ref  : (Bpad, CP)     f32   written only at the last layer
    h_ref    : (Bpad, D)      bf16  VMEM scratch carrying the layer activation
    """
    layer = pl.program_id(0)

    @pl.when(layer == 0)
    def _():
        h_ref[...] = x_ref[...]

    gates = (jnp.dot(h_ref[...], w_ref[0],
                     preferred_element_type=jnp.float32) + b_ref[0])
    i_g = jax.nn.sigmoid(gates[:, 0:HP])
    g_g = jnp.tanh(gates[:, HP:2 * HP])
    o_g = jax.nn.sigmoid(gates[:, 2 * HP:3 * HP])
    h_new = (o_g * jnp.tanh(i_g * g_g)).astype(jnp.bfloat16)  # (Bpad, HP)

    # Sliced, lane-aligned store (no concatenate with zeros). Columns HP..D
    # keep stale values that only multiply all-zero weight rows in layers >= 1.
    h_ref[:, :HP] = h_new

    @pl.when(layer == num_layers - 1)
    def _():
        out_ref[...] = (jnp.dot(h_new, w_fc_ref[...],
                                preferred_element_type=jnp.float32)
                        + b_fc_ref[...])


# --------------------------------------------------------------------------
# Wrapper
# --------------------------------------------------------------------------
def metadata_lstm_forward(x, packed, *, input_dim, hidden_dim, num_layers,
                          num_classes, force_path=None):
    """packed: dict from pack_params (stacked, padded, bf16 weights)."""
    batch = x.shape[0]
    H = hidden_dim
    HP = _round_up(H, 128)
    D = max(_round_up(input_dim, 128), HP)
    CP = _round_up(num_classes, 128)
    # Pad rows to 16 so the bf16 sublane-packed (16,128) operand tile is full.
    Bpad = _round_up(max(batch, 1), 16)

    x_p = (jnp.zeros((Bpad, D), jnp.bfloat16)
           .at[:batch, :input_dim].set(x.astype(jnp.bfloat16)))

    args = (x_p, packed["w_stack"], packed["b_stack"],
            packed["w_fc"], packed["b_fc"])

    cap = _vmem_capacity_bytes()
    layer_bytes = D * 3 * HP * 2 + 3 * HP * 4
    resident_bytes = Bpad * D * 2 + HP * CP * 2 + CP * 4 + Bpad * CP * 4
    fused_window = resident_bytes + num_layers * layer_bytes + Bpad * 3 * HP * 4

    use_fused = fused_window <= min(int(0.45 * cap), 48 * 2**20)
    if force_path == "fused":
        use_fused = True
    elif force_path == "layered":
        use_fused = False

    # Advisory cost hint (batch ~8..16 => this kernel is weight-stream bound).
    flops = (2 * Bpad * D * 3 * HP
             + 2 * Bpad * HP * 3 * HP * max(num_layers - 1, 0)
             + 2 * Bpad * HP * CP)
    transcendentals = num_layers * Bpad * HP * 4
    bytes_accessed = (Bpad * D * 2 + num_layers * layer_bytes
                      + HP * CP * 2 + CP * 4 + Bpad * CP * 4)
    cost = pl.CostEstimate(flops=flops, transcendentals=transcendentals,
                           bytes_accessed=bytes_accessed)

    if use_fused:
        kernel = functools.partial(_fused_kernel, num_layers, HP, D)
        vmem_limit = int(min(max(4 * 2**20, 2 * fused_window), int(0.8 * cap)))
        grid_spec = pltpu.PrefetchScalarGridSpec(
            num_scalar_prefetch=0,
            grid=(1,),
            # Whole-array, single-copy VMEM residents: no double buffering.
            in_specs=[pl.BlockSpec(memory_space=pltpu.MemorySpace.VMEM)] * 5,
            out_specs=pl.BlockSpec((Bpad, CP), lambda i: (0, 0)),
        )
    else:
        kernel = functools.partial(_layered_kernel, num_layers, HP, D)
        w_bufs = 3 if num_layers >= 3 else 2
        layered_window = (Bpad * D * 2            # x (resident)
                          + w_bufs * layer_bytes  # pipelined layer weights+bias
                          + HP * CP * 2 + CP * 4  # fc (resident)
                          + 2 * Bpad * CP * 4     # output blocks
                          + Bpad * D * 2)         # h scratch
        vmem_limit = int(min(max(4 * 2**20, 2 * layered_window), int(0.8 * cap)))
        grid_spec = pltpu.PrefetchScalarGridSpec(
            num_scalar_prefetch=0,
            grid=(num_layers,),
            in_specs=[
                pl.BlockSpec(memory_space=pltpu.MemorySpace.VMEM),       # x
                _buffered_spec((1, D, 3 * HP), lambda l: (l, 0, 0), w_bufs),
                _buffered_spec((1, 1, 3 * HP), lambda l: (l, 0, 0), w_bufs),
                pl.BlockSpec(memory_space=pltpu.MemorySpace.VMEM),       # w_fc
                pl.BlockSpec(memory_space=pltpu.MemorySpace.VMEM),       # b_fc
            ],
            out_specs=pl.BlockSpec((Bpad, CP), lambda l: (0, 0)),
            scratch_shapes=[pltpu.VMEM((Bpad, D), jnp.bfloat16)],
        )

    out_padded = pl.pallas_call(
        kernel,
        out_shape=jax.ShapeDtypeStruct((Bpad, CP), jnp.float32),
        grid_spec=grid_spec,
        compiler_params=pltpu.CompilerParams(
            dimension_semantics=("arbitrary",),
            vmem_limit_bytes=vmem_limit,
        ),
        cost_estimate=cost,
    )(*args)

    return out_padded[:batch, :num_classes]


# --------------------------------------------------------------------------
# Parameter construction / packing / reference
# --------------------------------------------------------------------------
def init_params(key, input_dim, hidden_dim, num_layers, num_classes):
    """Deterministic synthetic parameters in PyTorch layout (uniform init)."""
    raw = {}
    k = 1.0 / jnp.sqrt(jnp.float32(hidden_dim))
    for l in range(num_layers):
        in_dim = input_dim if l == 0 else hidden_dim
        key, k1, k2, k3, k4 = jax.random.split(key, 5)
        raw[f"w_ih_{l}"] = jax.random.uniform(
            k1, (4 * hidden_dim, in_dim), jnp.float32, -k, k)
        # W_hh only multiplies the all-zero h0 (seq_len == 1) -> unused in fwd.
        raw[f"w_hh_{l}"] = jax.random.uniform(
            k2, (4 * hidden_dim, hidden_dim), jnp.float32, -k, k)
        raw[f"b_ih_{l}"] = jax.random.uniform(
            k3, (4 * hidden_dim,), jnp.float32, -k, k)
        raw[f"b_hh_{l}"] = jax.random.uniform(
            k4, (4 * hidden_dim,), jnp.float32, -k, k)
    key, k5, k6 = jax.random.split(key, 3)
    raw["w_fc"] = jax.random.uniform(
        k5, (num_classes, hidden_dim), jnp.float32, -k, k)
    raw["b_fc"] = jax.random.uniform(k6, (num_classes,), jnp.float32, -k, k)
    return raw


def pack_params(raw, *, input_dim, hidden_dim, num_layers, num_classes):
    """Stack, pad and bf16-cast the weights into the kernel layout.

    Per layer: keep only the i, g, o gate blocks of W_ih (the f gate multiplies
    the zero initial cell state), each padded to its own 128-lane block, rows
    padded to the common contraction dim D. Bias = b_ih + b_hh (same gates).
    """
    H = hidden_dim
    HP = _round_up(H, 128)
    D = max(_round_up(input_dim, 128), HP)
    CP = _round_up(num_classes, 128)

    w_stack = jnp.zeros((num_layers, D, 3 * HP), jnp.float32)
    b_stack = jnp.zeros((num_layers, 1, 3 * HP), jnp.float32)
    for l in range(num_layers):
        in_dim = input_dim if l == 0 else H
        w_ih = raw[f"w_ih_{l}"]                       # (4H, in_dim), gates i,f,g,o
        b = raw[f"b_ih_{l}"] + raw[f"b_hh_{l}"]       # (4H,)
        for slot, g0 in enumerate((0, 2, 3)):         # keep i, g, o
            w_g = w_ih[g0 * H:(g0 + 1) * H, :].T      # (in_dim, H)
            w_stack = w_stack.at[l, :in_dim, slot * HP:slot * HP + H].set(w_g)
            b_stack = b_stack.at[l, 0, slot * HP:slot * HP + H].set(
                b[g0 * H:(g0 + 1) * H])

    w_fc = jnp.zeros((HP, CP), jnp.float32).at[:H, :num_classes].set(raw["w_fc"].T)
    b_fc = jnp.zeros((1, CP), jnp.float32).at[0, :num_classes].set(raw["b_fc"])

    return {
        "w_stack": w_stack.astype(jnp.bfloat16),
        "b_stack": b_stack,                 # bias kept in f32 (tiny)
        "w_fc": w_fc.astype(jnp.bfloat16),
        "b_fc": b_fc,
    }


def reference_forward(x, raw, *, num_layers, hidden_dim):
    """Pure-JAX reference mirroring the kernel numerics (bf16 weights/operands,
    f32 accumulation), on unpadded shapes and PyTorch-layout params."""
    H = hidden_dim
    h = x
    for l in range(num_layers):
        w_t = raw[f"w_ih_{l}"].T.astype(jnp.bfloat16)           # (in_dim, 4H)
        b = (raw[f"b_ih_{l}"] + raw[f"b_hh_{l}"])[None, :]      # (1, 4H)
        gates = jnp.dot(h.astype(jnp.bfloat16), w_t,
                        preferred_element_type=jnp.float32) + b
        i_g = jax.nn.sigmoid(gates[:, 0:H])
        g_g = jnp.tanh(gates[:, 2 * H:3 * H])
        o_g = jax.nn.sigmoid(gates[:, 3 * H:4 * H])
        h = o_g * jnp.tanh(i_g * g_g)                           # f*c0 == 0
    return (jnp.dot(h.astype(jnp.bfloat16),
                    raw["w_fc"].T.astype(jnp.bfloat16),
                    preferred_element_type=jnp.float32)
            + raw["b_fc"][None, :])


if __name__ == "__main__":
    batch = 2
    input_dim = 16
    hidden_dim = 32
    num_layers = 2
    num_classes = 4

    key = jax.random.PRNGKey(0)
    key, kx = jax.random.split(key)
    x = jax.random.normal(kx, (batch, input_dim), jnp.float32)

    raw = init_params(key, input_dim, hidden_dim, num_layers, num_classes)
    packed = pack_params(raw, input_dim=input_dim, hidden_dim=hidden_dim,
                         num_layers=num_layers, num_classes=num_classes)
    ref = reference_forward(x, raw, num_layers=num_layers, hidden_dim=hidden_dim)

    # Default selection at these sizes is the fused single-step path.
    out = metadata_lstm_forward(
        x, packed,
        input_dim=input_dim, hidden_dim=hidden_dim,
        num_layers=num_layers, num_classes=num_classes,
    )
    out = jax.block_until_ready(out)
    assert out.shape == (batch, num_classes)
    assert jnp.allclose(out, ref, atol=1e-4, rtol=1e-4), "fused path mismatch"

    # Also exercise the large-hidden (layered/pipelined) fallback path.
    out_layered = metadata_lstm_forward(
        x, packed,
        input_dim=input_dim, hidden_dim=hidden_dim,
        num_layers=num_layers, num_classes=num_classes,
        force_path="layered",
    )
    out_layered = jax.block_until_ready(out_layered)
    assert jnp.allclose(out_layered, ref, atol=1e-4, rtol=1e-4), \
        "layered path mismatch"

    print("KERNEL_OK")
</pallas_src>

<mosaic_0001>
module attributes {stable_mosaic.version = 11 : i64} {
  func.func @_fused_kernel(%arg0: i32, %arg1: memref<16x128xbf16, #tpu.memory_space<vmem>>, %arg2: memref<2x128x384xbf16, #tpu.memory_space<vmem>>, %arg3: memref<2x1x384xf32, #tpu.memory_space<vmem>>, %arg4: memref<128x128xbf16, #tpu.memory_space<vmem>>, %arg5: memref<1x128xf32, #tpu.memory_space<vmem>>, %arg6: memref<16x128xf32, #tpu.memory_space<vmem>>) attributes {dimension_semantics = [#tpu.dimension_semantics<arbitrary>], iteration_bounds = array<i64: 1>, scalar_prefetch = 0 : i64, scratch_operands = 0 : i64, tpu.core_type = #tpu.core_type<tc>, window_params = [{pipeline_mode = #tpu.pipeline_mode<synchronous>, transform_indices = @transform_0, window_bounds = array<i64: 16, 128>}, {pipeline_mode = #tpu.pipeline_mode<synchronous>, transform_indices = @transform_1, window_bounds = array<i64: 2, 128, 384>}, {pipeline_mode = #tpu.pipeline_mode<synchronous>, transform_indices = @transform_2, window_bounds = array<i64: 2, 1, 384>}, {pipeline_mode = #tpu.pipeline_mode<synchronous>, transform_indices = @transform_3, window_bounds = array<i64: 128, 128>}, {pipeline_mode = #tpu.pipeline_mode<synchronous>, transform_indices = @transform_4, window_bounds = array<i64: 1, 128>}, {pipeline_mode = #tpu.pipeline_mode<synchronous>, transform_indices = @transform_5, window_bounds = array<i64: 16, 128>}]} {
    %c0 = arith.constant 0 : index
    %c0_0 = arith.constant 0 : index
    %0 = vector.load %arg1[%c0, %c0_0] : memref<16x128xbf16, #tpu.memory_space<vmem>>, vector<16x128xbf16>
    %c0_1 = arith.constant 0 : index
    %c0_2 = arith.constant 0 : index
    %c0_3 = arith.constant 0 : index
    %1 = vector.load %arg2[%c0_1, %c0_2, %c0_3] : memref<2x128x384xbf16, #tpu.memory_space<vmem>>, vector<1x128x384xbf16>
    %2 = vector.shape_cast %1 : vector<1x128x384xbf16> to vector<128x384xbf16>
    %cst = arith.constant dense<0.000000e+00> : vector<16x384xf32>
    %3 = tpu.matmul %0, %2, %cst {dimension_numbers = #tpu.dot_dimension_numbers<[1], [0], [0], [1], [0, 0, 1, 1], [], []>} : vector<16x128xbf16>, vector<128x384xbf16>, vector<16x384xf32> -> vector<16x384xf32>
    %c0_4 = arith.constant 0 : index
    %c0_5 = arith.constant 0 : index
    %c0_6 = arith.constant 0 : index
    %4 = vector.load %arg3[%c0_4, %c0_5, %c0_6] : memref<2x1x384xf32, #tpu.memory_space<vmem>>, vector<1x1x384xf32>
    %5 = vector.shape_cast %4 : vector<1x1x384xf32> to vector<1x384xf32>
    %6 = vector.broadcast %5 : vector<1x384xf32> to vector<16x384xf32>
    %7 = arith.addf %3, %6 : vector<16x384xf32>
    %8 = vector.extract_strided_slice %7 {offsets = [0, 0], sizes = [16, 128], strides = [1, 1]} : vector<16x384xf32> to vector<16x128xf32>
    %9 = arith.negf %8 : vector<16x128xf32>
    %10 = math.exp %9 : vector<16x128xf32>
    %cst_7 = arith.constant 1.000000e+00 : f32
    %11 = vector.broadcast %cst_7 : f32 to vector<16x128xf32>
    %12 = arith.addf %11, %10 : vector<16x128xf32>
    %13 = arith.divf %11, %12 : vector<16x128xf32>
    %14 = vector.extract_strided_slice %7 {offsets = [0, 128], sizes = [16, 128], strides = [1, 1]} : vector<16x384xf32> to vector<16x128xf32>
    %15 = math.tanh %14 : vector<16x128xf32>
    %16 = vector.extract_strided_slice %7 {offsets = [0, 256], sizes = [16, 128], strides = [1, 1]} : vector<16x384xf32> to vector<16x128xf32>
    %17 = arith.negf %16 : vector<16x128xf32>
    %18 = math.exp %17 : vector<16x128xf32>
    %cst_8 = arith.constant 1.000000e+00 : f32
    %19 = vector.broadcast %cst_8 : f32 to vector<16x128xf32>
    %20 = arith.addf %19, %18 : vector<16x128xf32>
    %21 = arith.divf %19, %20 : vector<16x128xf32>
    %22 = arith.mulf %13, %15 : vector<16x128xf32>
    %23 = math.tanh %22 : vector<16x128xf32>
    %24 = arith.mulf %21, %23 : vector<16x128xf32>
    %25 = arith.truncf %24 : vector<16x128xf32> to vector<16x128xbf16>
    %c1_i32 = arith.constant 1 : i32
    %26 = arith.index_cast %c1_i32 : i32 to index
    %c0_9 = arith.constant 0 : index
    %c0_10 = arith.constant 0 : index
    %27 = vector.load %arg2[%26, %c0_9, %c0_10] : memref<2x128x384xbf16, #tpu.memory_space<vmem>>, vector<1x128x384xbf16>
    %28 = vector.shape_cast %27 : vector<1x128x384xbf16> to vector<128x384xbf16>
    %cst_11 = arith.constant dense<0.000000e+00> : vector<16x384xf32>
    %29 = tpu.matmul %25, %28, %cst_11 {dimension_numbers = #tpu.dot_dimension_numbers<[1], [0], [0], [1], [0, 0, 1, 1], [], []>} : vector<16x128xbf16>, vector<128x384xbf16>, vector<16x384xf32> -> vector<16x384xf32>
    %30 = arith.index_cast %c1_i32 : i32 to index
    %c0_12 = arith.constant 0 : index
    %c0_13 = arith.constant 0 : index
    %31 = vector.load %arg3[%30, %c0_12, %c0_13] : memref<2x1x384xf32, #tpu.memory_space<vmem>>, vector<1x1x384xf32>
    %32 = vector.shape_cast %31 : vector<1x1x384xf32> to vector<1x384xf32>
    %33 = vector.broadcast %32 : vector<1x384xf32> to vector<16x384xf32>
    %34 = arith.addf %29, %33 : vector<16x384xf32>
    %35 = vector.extract_strided_slice %34 {offsets = [0, 0], sizes = [16, 128], strides = [1, 1]} : vector<16x384xf32> to vector<16x128xf32>
    %36 = arith.negf %35 : vector<16x128xf32>
    %37 = math.exp %36 : vector<16x128xf32>
    %cst_14 = arith.constant 1.000000e+00 : f32
    %38 = vector.broadcast %cst_14 : f32 to vector<16x128xf32>
    %39 = arith.addf %38, %37 : vector<16x128xf32>
    %40 = arith.divf %38, %39 : vector<16x128xf32>
    %41 = vector.extract_strided_slice %34 {offsets = [0, 128], sizes = [16, 128], strides = [1, 1]} : vector<16x384xf32> to vector<16x128xf32>
    %42 = math.tanh %41 : vector<16x128xf32>
    %43 = vector.extract_strided_slice %34 {offsets = [0, 256], sizes = [16, 128], strides = [1, 1]} : vector<16x384xf32> to vector<16x128xf32>
    %44 = arith.negf %43 : vector<16x128xf32>
    %45 = math.exp %44 : vector<16x128xf32>
    %cst_15 = arith.constant 1.000000e+00 : f32
    %46 = vector.broadcast %cst_15 : f32 to vector<16x128xf32>
    %47 = arith.addf %46, %45 : vector<16x128xf32>
    %48 = arith.divf %46, %47 : vector<16x128xf32>
    %49 = arith.mulf %40, %42 : vector<16x128xf32>
    %50 = math.tanh %49 : vector<16x128xf32>
    %51 = arith.mulf %48, %50 : vector<16x128xf32>
    %52 = arith.truncf %51 : vector<16x128xf32> to vector<16x128xbf16>
    %c1_i32_16 = arith.constant 1 : i32
    %c0_17 = arith.constant 0 : index
    %c0_18 = arith.constant 0 : index
    %53 = vector.load %arg4[%c0_17, %c0_18] : memref<128x128xbf16, #tpu.memory_space<vmem>>, vector<128x128xbf16>
    %cst_19 = arith.constant dense<0.000000e+00> : vector<16x128xf32>
    %54 = tpu.matmul %52, %53, %cst_19 {dimension_numbers = #tpu.dot_dimension_numbers<[1], [0], [0], [1], [0, 0, 1, 1], [], []>} : vector<16x128xbf16>, vector<128x128xbf16>, vector<16x128xf32> -> vector<16x128xf32>
    %c0_20 = arith.constant 0 : index
    %c0_21 = arith.constant 0 : index
    %55 = vector.load %arg5[%c0_20, %c0_21] : memref<1x128xf32, #tpu.memory_space<vmem>>, vector<1x128xf32>
    %56 = vector.broadcast %55 : vector<1x128xf32> to vector<16x128xf32>
    %57 = arith.addf %54, %56 : vector<16x128xf32>
    %c0_22 = arith.constant 0 : index
    %c0_23 = arith.constant 0 : index
    %58 = vector.load %arg6[%c0_22, %c0_23] : memref<16x128xf32, #tpu.memory_space<vmem>>, vector<16x128xf32>
    tpu.vector_store %arg6[%c0_22, %c0_23], %57 {strides = array<i32>} : memref<16x128xf32, #tpu.memory_space<vmem>>, vector<16x128xf32>,
    return
  }
  func.func @transform_0(%arg0: i32) -> (i32, i32) {
    %c0_i32 = arith.constant 0 : i32
    %c0_i32_0 = arith.constant 0 : i32
    %c0_i32_1 = arith.constant 0 : i32
    return %c0_i32, %c0_i32_0 : i32, i32
  }
  func.func @transform_1(%arg0: i32) -> (i32, i32, i32) {
    %c0_i32 = arith.constant 0 : i32
    %c0_i32_0 = arith.constant 0 : i32
    %c0_i32_1 = arith.constant 0 : i32
    %c0_i32_2 = arith.constant 0 : i32
    return %c0_i32, %c0_i32_0, %c0_i32_1 : i32, i32, i32
  }
  func.func @transform_2(%arg0: i32) -> (i32, i32, i32) {
    %c0_i32 = arith.constant 0 : i32
    %c0_i32_0 = arith.constant 0 : i32
    %c0_i32_1 = arith.constant 0 : i32
    %c0_i32_2 = arith.constant 0 : i32
    return %c0_i32, %c0_i32_0, %c0_i32_1 : i32, i32, i32
  }
  func.func @transform_3(%arg0: i32) -> (i32, i32) {
    %c0_i32 = arith.constant 0 : i32
    %c0_i32_0 = arith.constant 0 : i32
    %c0_i32_1 = arith.constant 0 : i32
    return %c0_i32, %c0_i32_0 : i32, i32
  }
  func.func @transform_4(%arg0: i32) -> (i32, i32) {
    %c0_i32 = arith.constant 0 : i32
    %c0_i32_0 = arith.constant 0 : i32
    %c0_i32_1 = arith.constant 0 : i32
    return %c0_i32, %c0_i32_0 : i32, i32
  }
  func.func @transform_5(%arg0: i32) -> (i32, i32) {
    %c0_i32 = arith.constant 0 : i32
    %c0_i32_0 = arith.constant 0 : i32
    %c0_i32_1 = arith.constant 0 : i32
    return %c0_i32, %c0_i32_0 : i32, i32
  }
}

</mosaic_0001>

<llo_original>
// kernel: tpu_custom_call.1
$region0: #{tpu_custom_call.1}
  #allocation0 [shape = 'u32[]', space=smem, size = 0x4, offset = 0x4, fixed_abs, tag = 'smem constant byte address 0x4 - core index']
  #allocation1 [shape = 'u32[144,128]{1,0:T(1,128)}', space=vmem, size = 0x12000, scoped, tag = 'internal scratch']
  %s0 = inlined_call_operand.hbm [shape: bf16[16,128], index: 0, kind: input, shape index: {}]
  %s1 = inlined_call_operand.hbm [shape: bf16[2,128,384], index: 1, kind: input, shape index: {}]
  %s2 = inlined_call_operand.vmem [shape: f32[2,1,384], index: 2, kind: input, shape index: {}]
  %s3 = inlined_call_operand.hbm [shape: bf16[128,128], index: 3, kind: input, shape index: {}]
  %s4 = inlined_call_operand.vmem [shape: f32[1,128], index: 4, kind: input, shape index: {}]
  %s5 = inlined_call_operand.hbm [shape: f32[16,128], index: 5, kind: output, shape index: {}]
  %s6 = sld [smem:[#allocation0]]
  $region42: #{tpu_custom_call.1} parent=0
    _
  %s8 = ssub.s32 1, %s6
  %s9 = scalar_select 0, %s8, %s6
  $region1: #{tpu_custom_call.1} parent=0
    #allocation2 [shape = 'u8[4096]{0}', space=vmem, size = 0x1000, scoped, tag = 'input window, operand 0, single buffered']
    #allocation3 [shape = 's32[1]{0}', space=sflag, size = 0x4, scoped, tag = 'scoped memory for tpu_custom_call.1']
    #allocation4 [shape = 's32[1]{0}', space=sflag, size = 0x4, scoped, tag = 'scoped memory for tpu_custom_call.1']
    #allocation5 [shape = 'u8[196608]{0}', space=vmem, size = 0x30000, scoped, tag = 'input window, operand 1, single buffered']
    #allocation6 [shape = 's32[1]{0}', space=sflag, size = 0x4, scoped, tag = 'scoped memory for tpu_custom_call.1']
    #allocation7 [shape = 'u8[32768]{0}', space=vmem, size = 0x8000, scoped, tag = 'input window, operand 3, single buffered']
    #allocation8 [shape = 'u8[8192]{0}', space=vmem, size = 0x2000, scoped, tag = 'output window, operand 0, single buffered']
    %10 = vsyncpa [#allocation3], 0
    %11 = vsyncpa [#allocation6], 0
    %12 = vsyncpa [#allocation4], 0
    // Predicated region
    $region2: #{tpu_custom_call.1} parent=1 // pred_check
      _
    $region3: #{tpu_custom_call.1} parent=1 // pred_check_branch
      %14 = sbr.rel (0) target = $region5
    $region4: #{tpu_custom_call.1} parent=1 // pred_region
      %s16 = ssub.s32 128, 128
      %17 = vsyncadd [#allocation3], %s16
      %s18 = sshll.u32 [#allocation2], 4
      %s19 = int_to_ptr.vmem [resolvable:$true] %s18
      %24 = dma.hbm_to_vmem [thread:$0]  %s0, 128, %s19, [#allocation3], 64, 64, 4
    $region5: #{tpu_custom_call.1} parent=1 // pred_fallthru
      _
    // Predicated region
    $region6: #{tpu_custom_call.1} parent=1 // pred_check
      _
    $region7: #{tpu_custom_call.1} parent=1 // pred_check_branch
      %26 = sbr.rel (0) target = $region9
    $region8: #{tpu_custom_call.1} parent=1 // pred_region
      %s28 = ssub.s32 6144, 6144
      %29 = vsyncadd [#allocation6], %s28
      %s30 = sshll.u32 [#allocation5], 4
      %s31 = int_to_ptr.vmem [resolvable:$true] %s30
      %36 = dma.hbm_to_vmem [thread:$0]  %s1, 6144, %s31, [#allocation6], 192, 192, 12
    $region9: #{tpu_custom_call.1} parent=1 // pred_fallthru
      _
    // Predicated region
    $region10: #{tpu_custom_call.1} parent=1 // pred_check
      _
    $region11: #{tpu_custom_call.1} parent=1 // pred_check_branch
      %38 = sbr.rel (0) target = $region13
    $region12: #{tpu_custom_call.1} parent=1 // pred_region
      _
    $region13: #{tpu_custom_call.1} parent=1 // pred_fallthru
      _
    // Predicated region
    $region14: #{tpu_custom_call.1} parent=1 // pred_check
      _
    $region15: #{tpu_custom_call.1} parent=1 // pred_check_branch
      %40 = sbr.rel (0) target = $region17
    $region16: #{tpu_custom_call.1} parent=1 // pred_region
      %s42 = ssub.s32 1024, 1024
      %43 = vsyncadd [#allocation6], %s42
      %s44 = sshll.u32 [#allocation7], 4
      %s45 = int_to_ptr.vmem [resolvable:$true] %s44
      %50 = dma.hbm_to_vmem [thread:$0]  %s3, 1024, %s45, [#allocation6], 64, 64, 4
    $region17: #{tpu_custom_call.1} parent=1 // pred_fallthru
      _
    // Predicated region
    $region18: #{tpu_custom_call.1} parent=1 // pred_check
      _
    $region19: #{tpu_custom_call.1} parent=1 // pred_check_branch
      %52 = sbr.rel (0) target = $region21
    $region20: #{tpu_custom_call.1} parent=1 // pred_region
      _
    $region21: #{tpu_custom_call.1} parent=1 // pred_fallthru
      _
    // Predicated region
    $region22: #{tpu_custom_call.1} parent=1 // pred_check
      _
    $region23: #{tpu_custom_call.1} parent=1 // pred_check_branch
      %54 = sbr.rel (0) target = $region25
    $region24: #{tpu_custom_call.1} parent=1 // pred_region
      %55 = dma.done [#allocation3], 128
    $region25: #{tpu_custom_call.1} parent=1 // pred_fallthru
      _
    // Predicated region
    $region26: #{tpu_custom_call.1} parent=1 // pred_check
      _
    $region27: #{tpu_custom_call.1} parent=1 // pred_check_branch
      %57 = sbr.rel (0) target = $region29
    $region28: #{tpu_custom_call.1} parent=1 // pred_region
      %58 = dma.done [#allocation6], 6144
    $region29: #{tpu_custom_call.1} parent=1 // pred_fallthru
      _
    // Predicated region
    $region30: #{tpu_custom_call.1} parent=1 // pred_check
      _
    $region31: #{tpu_custom_call.1} parent=1 // pred_check_branch
      %60 = sbr.rel (0) target = $region33
    $region32: #{tpu_custom_call.1} parent=1 // pred_region
      %61 = dma.done [#allocation6], 1024
    $region33: #{tpu_custom_call.1} parent=1 // pred_fallthru
      _
    %v63 = vld [vmem:[#allocation2] sm:$0xf]
    %v64 = vld [vmem:[#allocation2 + $0x4] sm:$0xf]
    %v65 = vld [vmem:[#allocation5] sm:$0xff]
    %v66 = vld [vmem:[#allocation5 + $0x8] sm:$0xf]
    %v67 = vld [vmem:[#allocation5 + $0xc] sm:$0xff]
    %v68 = vld [vmem:[#allocation5 + $0x14] sm:$0xf]
    %v69 = vld [vmem:[#allocation5 + $0x18] sm:$0xff]
    %v70 = vld [vmem:[#allocation5 + $0x20] sm:$0xf]
    %v71 = vld [vmem:[#allocation5 + $0x24] sm:$0xff]
    %v72 = vld [vmem:[#allocation5 + $0x2c] sm:$0xf]
    %v73 = vld [vmem:[#allocation5 + $0x30] sm:$0xff]
    %v74 = vld [vmem:[#allocation5 + $0x38] sm:$0xf]
    %v75 = vld [vmem:[#allocation5 + $0x3c] sm:$0xff]
    %v76 = vld [vmem:[#allocation5 + $0x44] sm:$0xf]
    %v77 = vld [vmem:[#allocation5 + $0x48] sm:$0xff]
    %v78 = vld [vmem:[#allocation5 + $0x50] sm:$0xf]
    %v79 = vld [vmem:[#allocation5 + $0x54] sm:$0xff]
    %v80 = vld [vmem:[#allocation5 + $0x5c] sm:$0xf]
    %v81 = vld [vmem:[#allocation5 + $0x60] sm:$0xff]
    %v82 = vld [vmem:[#allocation5 + $0x68] sm:$0xf]
    %v83 = vld [vmem:[#allocation5 + $0x6c] sm:$0xff]
    %v84 = vld [vmem:[#allocation5 + $0x74] sm:$0xf]
    %v85 = vld [vmem:[#allocation5 + $0x78] sm:$0xff]
    %v86 = vld [vmem:[#allocation5 + $0x80] sm:$0xf]
    %v87 = vld [vmem:[#allocation5 + $0x84] sm:$0xff]
    %v88 = vld [vmem:[#allocation5 + $0x8c] sm:$0xf]
    %v89 = vld [vmem:[#allocation5 + $0x90] sm:$0xff]
    %v90 = vld [vmem:[#allocation5 + $0x98] sm:$0xf]
    %v91 = vld [vmem:[#allocation5 + $0x9c] sm:$0xff]
    %v92 = vld [vmem:[#allocation5 + $0xa4] sm:$0xf]
    %v93 = vld [vmem:[#allocation5 + $0xa8] sm:$0xff]
    %v94 = vld [vmem:[#allocation5 + $0xb0] sm:$0xf]
    %v95 = vld [vmem:[#allocation5 + $0xb4] sm:$0xff]
    %v96 = vld [vmem:[#allocation5 + $0xbc] sm:$0xf]
    %v97 = vld [vmem:[%s2] sm:$0x7]
    %v99 = vlaneseq
    %v100 = vshrl.u32 %v99, 7
    %v101 = vsub.s32 0, %v100
    %v102 = vrot.slane %v97, %v101
    %v103 = vlaneseq
    %v104 = vshrl.u32 %v103, 7
    %v105 = vsub.s32 1, %v104
    %v106 = vrot.slane %v97, %v105
    %v107 = vlaneseq
    %v108 = vshrl.u32 %v107, 7
    %v109 = vsub.s32 2, %v108
    %v110 = vrot.slane %v97, %v109
    %v116 = vunpack.c.l.b16 %v63
    %v117 = vunpack.c.l.b16 %v64
    %v118 = vpack.c.b16 %v117, %v116
    %v152 = vunpack.c.l.b16 %v65
    %v153 = vunpack.c.h.b16 %v65
    %v154 = vunpack.c.l.b16 %v66
    %v155 = vunpack.c.l.b16 %v67
    %v156 = vunpack.c.h.b16 %v67
    %v157 = vunpack.c.l.b16 %v68
    %v158 = vunpack.c.l.b16 %v69
    %v159 = vunpack.c.h.b16 %v69
    %v160 = vunpack.c.l.b16 %v70
    %v161 = vunpack.c.l.b16 %v71
    %v162 = vunpack.c.h.b16 %v71
    %v163 = vunpack.c.l.b16 %v72
    %v164 = vunpack.c.l.b16 %v73
    %v165 = vunpack.c.h.b16 %v73
    %v166 = vunpack.c.l.b16 %v74
    %v167 = vunpack.c.l.b16 %v75
    %v168 = vunpack.c.h.b16 %v75
    %v169 = vunpack.c.l.b16 %v76
    %v170 = vunpack.c.l.b16 %v77
    %v171 = vunpack.c.h.b16 %v77
    %v172 = vunpack.c.l.b16 %v78
    %v173 = vunpack.c.l.b16 %v79
    %v174 = vunpack.c.h.b16 %v79
    %v175 = vunpack.c.l.b16 %v80
    %v176 = vunpack.c.l.b16 %v81
    %v177 = vunpack.c.h.b16 %v81
    %v178 = vunpack.c.l.b16 %v82
    %v179 = vunpack.c.l.b16 %v83
    %v180 = vunpack.c.h.b16 %v83
    %v181 = vunpack.c.l.b16 %v84
    %v182 = vunpack.c.l.b16 %v85
    %v183 = vunpack.c.h.b16 %v85
    %v184 = vunpack.c.l.b16 %v86
    %v185 = vunpack.c.l.b16 %v87
    %v186 = vunpack.c.h.b16 %v87
    %v187 = vunpack.c.l.b16 %v88
    %v188 = vunpack.c.l.b16 %v89
    %v189 = vunpack.c.h.b16 %v89
    %v190 = vunpack.c.l.b16 %v90
    %v191 = vunpack.c.l.b16 %v91
    %v192 = vunpack.c.h.b16 %v91
    %v193 = vunpack.c.l.b16 %v92
    %v194 = vunpack.c.l.b16 %v93
    %v195 = vunpack.c.h.b16 %v93
    %v196 = vunpack.c.l.b16 %v94
    %v197 = vunpack.c.l.b16 %v95
    %v198 = vunpack.c.h.b16 %v95
    %v199 = vunpack.c.l.b16 %v96
    %v200 = vpack.c.b16 %v155, %v152
    %v201 = vpack.c.b16 %v156, %v153
    %v202 = vpack.c.b16 %v157, %v154
    %v203 = vpack.c.b16 %v161, %v158
    %v204 = vpack.c.b16 %v162, %v159
    %v205 = vpack.c.b16 %v163, %v160
    %v206 = vpack.c.b16 %v167, %v164
    %v207 = vpack.c.b16 %v168, %v165
    %v208 = vpack.c.b16 %v169, %v166
    %v209 = vpack.c.b16 %v173, %v170
    %v210 = vpack.c.b16 %v174, %v171
    %v211 = vpack.c.b16 %v175, %v172
    %v212 = vpack.c.b16 %v179, %v176
    %v213 = vpack.c.b16 %v180, %v177
    %v214 = vpack.c.b16 %v181, %v178
    %v215 = vpack.c.b16 %v185, %v182
    %v216 = vpack.c.b16 %v186, %v183
    %v217 = vpack.c.b16 %v187, %v184
    %v218 = vpack.c.b16 %v191, %v188
    %v219 = vpack.c.b16 %v192, %v189
    %v220 = vpack.c.b16 %v193, %v190
    %v221 = vpack.c.b16 %v197, %v194
    %v222 = vpack.c.b16 %v198, %v195
    %v223 = vpack.c.b16 %v199, %v196
    %248 = vmatprep.subr.bf16.mxu0 %v201
    %249 = vmatpush1.bf16.msra.mxu0 %v200
    %250 = vmatprep.subr.bf16.mxu0 %v204
    %251 = vmatpush1.bf16.msra.mxu0 %v203
    %252 = vmatprep.subr.bf16.mxu0 %v207
    %253 = vmatpush1.bf16.msra.mxu0 %v206
    %254 = vmatprep.subr.bf16.mxu0 %v210
    %255 = vmatpush1.bf16.msra.mxu0 %v209
    %256 = vmatprep.subr.bf16.mxu0 %v213
    %257 = vmatpush1.bf16.msra.mxu0 %v212
    %258 = vmatprep.subr.bf16.mxu0 %v216
    %259 = vmatpush1.bf16.msra.mxu0 %v215
    %260 = vmatprep.subr.bf16.mxu0 %v219
    %261 = vmatpush1.bf16.msra.mxu0 %v218
    %262 = vmatprep.subr.bf16.mxu0 %v222
    %263 = vmatpush1.bf16.msra.mxu0 %v221
    %264 = vmatprep.subr.bf16.mxu0 0
    %265 = vmatpush1.bf16.msra.mxu0 0
    %266 = vmatprep.subr.bf16.mxu0 0
    %267 = vmatpush1.bf16.msra.mxu0 0
    %268 = vmatprep.subr.bf16.mxu0 0
    %269 = vmatpush1.bf16.msra.mxu0 0
    %270 = vmatprep.subr.bf16.mxu0 0
    %271 = vmatpush1.bf16.msra.mxu0 0
    %272 = vmatprep.subr.bf16.mxu0 0
    %273 = vmatpush1.bf16.msra.mxu0 0
    %274 = vmatprep.subr.bf16.mxu0 0
    %275 = vmatpush1.bf16.msra.mxu0 0
    %276 = vmatprep.subr.bf16.mxu0 0
    %277 = vmatpush1.bf16.msra.mxu0 0
    %278 = vmatprep.subr.bf16.mxu0 0
    %279 = vmatpush1.bf16.msra.mxu0 0
    %280 = vmatprep.mubr.bf16.mxu0 0
    %281 = vmatmul.mubr.bf16.gmra.mrb[0].mxu0 %v118
    %v282 = vpop.f32.mrb[0].mxu0
    %v283 = vadd.f32 %v102, %v282
    %v284 = vpop.f32.mrb[0].mxu0
    %v285 = vadd.f32 %v106, %v284
    %v286 = vpop.f32.mrb[0].mxu0
    %v287 = vadd.f32 %v102, %v286
    %v288 = vpop.f32.mrb[0].mxu0
    %v289 = vadd.f32 %v106, %v288
    %290 = vdwg.mxu0
    %291 = vmatprep.subr.bf16.mxu0 0
    %292 = vmatpush1.bf16.msra.mxu0 %v202
    %293 = vmatprep.subr.bf16.mxu0 0
    %294 = vmatpush1.bf16.msra.mxu0 %v205
    %295 = vmatprep.subr.bf16.mxu0 0
    %296 = vmatpush1.bf16.msra.mxu0 %v208
    %297 = vmatprep.subr.bf16.mxu0 0
    %298 = vmatpush1.bf16.msra.mxu0 %v211
    %299 = vmatprep.subr.bf16.mxu0 0
    %300 = vmatpush1.bf16.msra.mxu0 %v214
    %301 = vmatprep.subr.bf16.mxu0 0
    %302 = vmatpush1.bf16.msra.mxu0 %v217
    %303 = vmatprep.subr.bf16.mxu0 0
    %304 = vmatpush1.bf16.msra.mxu0 %v220
    %305 = vmatprep.subr.bf16.mxu0 0
    %306 = vmatpush1.bf16.msra.mxu0 %v223
    %307 = vmatprep.subr.bf16.mxu0 0
    %308 = vmatpush1.bf16.msra.mxu0 0
    %309 = vmatprep.subr.bf16.mxu0 0
    %310 = vmatpush1.bf16.msra.mxu0 0
    %311 = vmatprep.subr.bf16.mxu0 0
    %312 = vmatpush1.bf16.msra.mxu0 0
    %313 = vmatprep.subr.bf16.mxu0 0
    %314 = vmatpush1.bf16.msra.mxu0 0
    %315 = vmatprep.subr.bf16.mxu0 0
    %316 = vmatpush1.bf16.msra.mxu0 0
    %317 = vmatprep.subr.bf16.mxu0 0
    %318 = vmatpush1.bf16.msra.mxu0 0
    %319 = vmatprep.subr.bf16.mxu0 0
    %320 = vmatpush1.bf16.msra.mxu0 0
    %321 = vmatprep.subr.bf16.mxu0 0
    %322 = vmatpush1.bf16.msra.mxu0 0
    %323 = vmatprep.mubr.bf16.mxu0 0
    %324 = vmatmul.mubr.bf16.gmra.mrb[0].mxu0 %v118
    %v325 = vpop.f32.mrb[0].mxu0
    %v326 = vadd.f32 %v110, %v325
    %v327 = vpop.f32.mrb[0].mxu0
    %v328 = vpop.f32.mrb[0].mxu0
    %v329 = vadd.f32 %v110, %v328
    %v330 = vpop.f32.mrb[0].mxu0
    %331 = vdwg.mxu0
    %v332 = vxor.u32 %v283, 2147483648
    %v333 = vxor.u32 %v287, 2147483648
    %v334 = vmul.f32 %v332, 1.442695
    %v335 = vpow.pop %v334
    %v336 = vmul.f32 %v333, 1.442695
    %v337 = vpow.pop %v336
    %v338 = vadd.f32 %v335, 1.0
    %v339 = vadd.f32 %v337, 1.0
    %v340 = vrcp.pop %v338
    %v341 = vmul.f32 1.0, %v340
    %v342 = vrcp.pop %v339
    %v343 = vmul.f32 1.0, %v342
    %v344 = vtanh.pop %v285
    %v345 = vtanh.pop %v289
    %v346 = vxor.u32 %v326, 2147483648
    %v347 = vxor.u32 %v329, 2147483648
    %v348 = vmul.f32 %v346, 1.442695
    %v349 = vpow.pop %v348
    %v350 = vmul.f32 %v347, 1.442695
    %v351 = vpow.pop %v350
    %v352 = vadd.f32 %v349, 1.0
    %v353 = vadd.f32 %v351, 1.0
    %v354 = vrcp.pop %v352
    %v355 = vmul.f32 1.0, %v354
    %v356 = vrcp.pop %v353
    %v357 = vmul.f32 1.0, %v356
    %v358 = vmul.f32 %v341, %v344
    %v359 = vmul.f32 %v343, %v345
    %v360 = vtanh.pop %v358
    %v361 = vtanh.pop %v359
    %v362 = vmul.f32 %v355, %v360
    %v363 = vmul.f32 %v357, %v361
    %v364 = vpack.c.bf16 %v363, %v362
    %s365 = scalar_lea.vmem [#allocation5], 192
    %v366 = vld [vmem:[%s365] sm:$0xff]
    %v367 = vld [vmem:[%s365 + $0x8] sm:$0xf]
    %v368 = vld [vmem:[%s365 + $0xc] sm:$0xff]
    %v369 = vld [vmem:[%s365 + $0x14] sm:$0xf]
    %v370 = vld [vmem:[%s365 + $0x18] sm:$0xff]
    %v371 = vld [vmem:[%s365 + $0x20] sm:$0xf]
    %v372 = vld [vmem:[%s365 + $0x24] sm:$0xff]
    %v373 = vld [vmem:[%s365 + $0x2c] sm:$0xf]
    %v374 = vld [vmem:[%s365 + $0x30] sm:$0xff]
    %v375 = vld [vmem:[%s365 + $0x38] sm:$0xf]
    %v376 = vld [vmem:[%s365 + $0x3c] sm:$0xff]
    %v377 = vld [vmem:[%s365 + $0x44] sm:$0xf]
    %v378 = vld [vmem:[%s365 + $0x48] sm:$0xff]
    %v379 = vld [vmem:[%s365 + $0x50] sm:$0xf]
    %v380 = vld [vmem:[%s365 + $0x54] sm:$0xff]
    %v381 = vld [vmem:[%s365 + $0x5c] sm:$0xf]
    %v382 = vld [vmem:[%s365 + $0x60] sm:$0xff]
    %v383 = vld [vmem:[%s365 + $0x68] sm:$0xf]
    %v384 = vld [vmem:[%s365 + $0x6c] sm:$0xff]
    %v385 = vld [vmem:[%s365 + $0x74] sm:$0xf]
    %v386 = vld [vmem:[%s365 + $0x78] sm:$0xff]
    %v387 = vld [vmem:[%s365 + $0x80] sm:$0xf]
    %v388 = vld [vmem:[%s365 + $0x84] sm:$0xff]
    %v389 = vld [vmem:[%s365 + $0x8c] sm:$0xf]
    %v390 = vld [vmem:[%s365 + $0x90] sm:$0xff]
    %v391 = vld [vmem:[%s365 + $0x98] sm:$0xf]
    %v392 = vld [vmem:[%s365 + $0x9c] sm:$0xff]
    %v393 = vld [vmem:[%s365 + $0xa4] sm:$0xf]
    %v394 = vld [vmem:[%s365 + $0xa8] sm:$0xff]
    %v395 = vld [vmem:[%s365 + $0xb0] sm:$0xf]
    %v396 = vld [vmem:[%s365 + $0xb4] sm:$0xff]
    %v397 = vld [vmem:[%s365 + $0xbc] sm:$0xf]
    %s398 = scalar_lea.vmem %s2, 3
    %v399 = vld [vmem:[%s398] sm:$0x7]
    %v401 = vlaneseq
    %v402 = vshrl.u32 %v401, 7
    %v403 = vsub.s32 0, %v402
    %v404 = vrot.slane %v399, %v403
    %v405 = vlaneseq
    %v406 = vshrl.u32 %v405, 7
    %v407 = vsub.s32 1, %v406
    %v408 = vrot.slane %v399, %v407
    %v409 = vlaneseq
    %v410 = vshrl.u32 %v409, 7
    %v411 = vsub.s32 2, %v410
    %v412 = vrot.slane %v399, %v411
    %v448 = vunpack.c.l.b16 %v366
    %v449 = vunpack.c.h.b16 %v366
    %v450 = vunpack.c.l.b16 %v367
    %v451 = vunpack.c.l.b16 %v368
    %v452 = vunpack.c.h.b16 %v368
    %v453 = vunpack.c.l.b16 %v369
    %v454 = vunpack.c.l.b16 %v370
    %v455 = vunpack.c.h.b16 %v370
    %v456 = vunpack.c.l.b16 %v371
    %v457 = vunpack.c.l.b16 %v372
    %v458 = vunpack.c.h.b16 %v372
    %v459 = vunpack.c.l.b16 %v373
    %v460 = vunpack.c.l.b16 %v374
    %v461 = vunpack.c.h.b16 %v374
    %v462 = vunpack.c.l.b16 %v375
    %v463 = vunpack.c.l.b16 %v376
    %v464 = vunpack.c.h.b16 %v376
    %v465 = vunpack.c.l.b16 %v377
    %v466 = vunpack.c.l.b16 %v378
    %v467 = vunpack.c.h.b16 %v378
    %v468 = vunpack.c.l.b16 %v379
    %v469 = vunpack.c.l.b16 %v380
    %v470 = vunpack.c.h.b16 %v380
    %v471 = vunpack.c.l.b16 %v381
    %v472 = vunpack.c.l.b16 %v382
    %v473 = vunpack.c.h.b16 %v382
    %v474 = vunpack.c.l.b16 %v383
    %v475 = vunpack.c.l.b16 %v384
    %v476 = vunpack.c.h.b16 %v384
    %v477 = vunpack.c.l.b16 %v385
    %v478 = vunpack.c.l.b16 %v386
    %v479 = vunpack.c.h.b16 %v386
    %v480 = vunpack.c.l.b16 %v387
    %v481 = vunpack.c.l.b16 %v388
    %v482 = vunpack.c.h.b16 %v388
    %v483 = vunpack.c.l.b16 %v389
    %v484 = vunpack.c.l.b16 %v390
    %v485 = vunpack.c.h.b16 %v390
    %v486 = vunpack.c.l.b16 %v391
    %v487 = vunpack.c.l.b16 %v392
    %v488 = vunpack.c.h.b16 %v392
    %v489 = vunpack.c.l.b16 %v393
    %v490 = vunpack.c.l.b16 %v394
    %v491 = vunpack.c.h.b16 %v394
    %v492 = vunpack.c.l.b16 %v395
    %v493 = vunpack.c.l.b16 %v396
    %v494 = vunpack.c.h.b16 %v396
    %v495 = vunpack.c.l.b16 %v397
    %v496 = vpack.c.b16 %v451, %v448
    %v497 = vpack.c.b16 %v452, %v449
    %v498 = vpack.c.b16 %v453, %v450
    %v499 = vpack.c.b16 %v457, %v454
    %v500 = vpack.c.b16 %v458, %v455
    %v501 = vpack.c.b16 %v459, %v456
    %v502 = vpack.c.b16 %v463, %v460
    %v503 = vpack.c.b16 %v464, %v461
    %v504 = vpack.c.b16 %v465, %v462
    %v505 = vpack.c.b16 %v469, %v466
    %v506 = vpack.c.b16 %v470, %v467
    %v507 = vpack.c.b16 %v471, %v468
    %v508 = vpack.c.b16 %v475, %v472
    %v509 = vpack.c.b16 %v476, %v473
    %v510 = vpack.c.b16 %v477, %v474
    %v511 = vpack.c.b16 %v481, %v478
    %v512 = vpack.c.b16 %v482, %v479
    %v513 = vpack.c.b16 %v483, %v480
    %v514 = vpack.c.b16 %v487, %v484
    %v515 = vpack.c.b16 %v488, %v485
    %v516 = vpack.c.b16 %v489, %v486
    %v517 = vpack.c.b16 %v493, %v490
    %v518 = vpack.c.b16 %v494, %v491
    %v519 = vpack.c.b16 %v495, %v492
    %544 = vmatprep.subr.bf16.mxu0 %v497
    %545 = vmatpush1.bf16.msra.mxu0 %v496
    %546 = vmatprep.subr.bf16.mxu0 %v500
    %547 = vmatpush1.bf16.msra.mxu0 %v499
    %548 = vmatprep.subr.bf16.mxu0 %v503
    %549 = vmatpush1.bf16.msra.mxu0 %v502
    %550 = vmatprep.subr.bf16.mxu0 %v506
    %551 = vmatpush1.bf16.msra.mxu0 %v505
    %552 = vmatprep.subr.bf16.mxu0 %v509
    %553 = vmatpush1.bf16.msra.mxu0 %v508
    %554 = vmatprep.subr.bf16.mxu0 %v512
    %555 = vmatpush1.bf16.msra.mxu0 %v511
    %556 = vmatprep.subr.bf16.mxu0 %v515
    %557 = vmatpush1.bf16.msra.mxu0 %v514
    %558 = vmatprep.subr.bf16.mxu0 %v518
    %559 = vmatpush1.bf16.msra.mxu0 %v517
    %560 = vmatprep.subr.bf16.mxu0 0
    %561 = vmatpush1.bf16.msra.mxu0 0
    %562 = vmatprep.subr.bf16.mxu0 0
    %563 = vmatpush1.bf16.msra.mxu0 0
    %564 = vmatprep.subr.bf16.mxu0 0
    %565 = vmatpush1.bf16.msra.mxu0 0
    %566 = vmatprep.subr.bf16.mxu0 0
    %567 = vmatpush1.bf16.msra.mxu0 0
    %568 = vmatprep.subr.bf16.mxu0 0
    %569 = vmatpush1.bf16.msra.mxu0 0
    %570 = vmatprep.subr.bf16.mxu0 0
    %571 = vmatpush1.bf16.msra.mxu0 0
    %572 = vmatprep.subr.bf16.mxu0 0
    %573 = vmatpush1.bf16.msra.mxu0 0
    %574 = vmatprep.subr.bf16.mxu0 0
    %575 = vmatpush1.bf16.msra.mxu0 0
    %576 = vmatprep.mubr.bf16.mxu0 0
    %577 = vmatmul.mubr.bf16.gmra.mrb[0].mxu0 %v364
    %v578 = vpop.f32.mrb[0].mxu0
    %v579 = vadd.f32 %v404, %v578
    %v580 = vpop.f32.mrb[0].mxu0
    %v581 = vadd.f32 %v408, %v580
    %v582 = vpop.f32.mrb[0].mxu0
    %v583 = vadd.f32 %v404, %v582
    %v584 = vpop.f32.mrb[0].mxu0
    %v585 = vadd.f32 %v408, %v584
    %586 = vdwg.mxu0
    %587 = vmatprep.subr.bf16.mxu0 0
    %588 = vmatpush1.bf16.msra.mxu0 %v498
    %589 = vmatprep.subr.bf16.mxu0 0
    %590 = vmatpush1.bf16.msra.mxu0 %v501
    %591 = vmatprep.subr.bf16.mxu0 0
    %592 = vmatpush1.bf16.msra.mxu0 %v504
    %593 = vmatprep.subr.bf16.mxu0 0
    %594 = vmatpush1.bf16.msra.mxu0 %v507
    %595 = vmatprep.subr.bf16.mxu0 0
    %596 = vmatpush1.bf16.msra.mxu0 %v510
    %597 = vmatprep.subr.bf16.mxu0 0
    %598 = vmatpush1.bf16.msra.mxu0 %v513
    %599 = vmatprep.subr.bf16.mxu0 0
    %600 = vmatpush1.bf16.msra.mxu0 %v516
    %601 = vmatprep.subr.bf16.mxu0 0
    %602 = vmatpush1.bf16.msra.mxu0 %v519
    %603 = vmatprep.subr.bf16.mxu0 0
    %604 = vmatpush1.bf16.msra.mxu0 0
    %605 = vmatprep.subr.bf16.mxu0 0
    %606 = vmatpush1.bf16.msra.mxu0 0
    %607 = vmatprep.subr.bf16.mxu0 0
    %608 = vmatpush1.bf16.msra.mxu0 0
    %609 = vmatprep.subr.bf16.mxu0 0
    %610 = vmatpush1.bf16.msra.mxu0 0
    %611 = vmatprep.subr.bf16.mxu0 0
    %612 = vmatpush1.bf16.msra.mxu0 0
    %613 = vmatprep.subr.bf16.mxu0 0
    %614 = vmatpush1.bf16.msra.mxu0 0
    %615 = vmatprep.subr.bf16.mxu0 0
    %616 = vmatpush1.bf16.msra.mxu0 0
    %617 = vmatprep.subr.bf16.mxu0 0
    %618 = vmatpush1.bf16.msra.mxu0 0
    %619 = vmatprep.mubr.bf16.mxu0 0
    %620 = vmatmul.mubr.bf16.gmra.mrb[0].mxu0 %v364
    %v621 = vpop.f32.mrb[0].mxu0
    %v622 = vadd.f32 %v412, %v621
    %v623 = vpop.f32.mrb[0].mxu0
    %v624 = vpop.f32.mrb[0].mxu0
    %v625 = vadd.f32 %v412, %v624
    %v626 = vpop.f32.mrb[0].mxu0
    %627 = vdwg.mxu0
    %v628 = vxor.u32 %v579, 2147483648
    %v629 = vxor.u32 %v583, 2147483648
    %v630 = vmul.f32 %v628, 1.442695
    %v631 = vpow.pop %v630
    %v632 = vmul.f32 %v629, 1.442695
    %v633 = vpow.pop %v632
    %v634 = vadd.f32 %v631, 1.0
    %v635 = vadd.f32 %v633, 1.0
    %v636 = vrcp.pop %v634
    %v637 = vmul.f32 1.0, %v636
    %v638 = vrcp.pop %v635
    %v639 = vmul.f32 1.0, %v638
    %v640 = vtanh.pop %v581
    %v641 = vtanh.pop %v585
    %v642 = vxor.u32 %v622, 2147483648
    %v643 = vxor.u32 %v625, 2147483648
    %v644 = vmul.f32 %v642, 1.442695
    %v645 = vpow.pop %v644
    %v646 = vmul.f32 %v643, 1.442695
    %v647 = vpow.pop %v646
    %v648 = vadd.f32 %v645, 1.0
    %v649 = vadd.f32 %v647, 1.0
    %v650 = vrcp.pop %v648
    %v651 = vmul.f32 1.0, %v650
    %v652 = vrcp.pop %v649
    %v653 = vmul.f32 1.0, %v652
    %v654 = vmul.f32 %v637, %v640
    %v655 = vmul.f32 %v639, %v641
    %v656 = vtanh.pop %v654
    %v657 = vtanh.pop %v655
    %v658 = vmul.f32 %v651, %v656
    %v659 = vmul.f32 %v653, %v657
    %v660 = vpack.c.bf16 %v659, %v658
    %v661 = vld [vmem:[#allocation7] sm:$0xf]
    %v662 = vld [vmem:[#allocation7 + $0x4] sm:$0xf]
    %v663 = vld [vmem:[#allocation7 + $0x8] sm:$0xf]
    %v664 = vld [vmem:[#allocation7 + $0xc] sm:$0xf]
    %v665 = vld [vmem:[#allocation7 + $0x10] sm:$0xf]
    %v666 = vld [vmem:[#allocation7 + $0x14] sm:$0xf]
    %v667 = vld [vmem:[#allocation7 + $0x18] sm:$0xf]
    %v668 = vld [vmem:[#allocation7 + $0x1c] sm:$0xf]
    %v669 = vld [vmem:[#allocation7 + $0x20] sm:$0xf]
    %v670 = vld [vmem:[#allocation7 + $0x24] sm:$0xf]
    %v671 = vld [vmem:[#allocation7 + $0x28] sm:$0xf]
    %v672 = vld [vmem:[#allocation7 + $0x2c] sm:$0xf]
    %v673 = vld [vmem:[#allocation7 + $0x30] sm:$0xf]
    %v674 = vld [vmem:[#allocation7 + $0x34] sm:$0xf]
    %v675 = vld [vmem:[#allocation7 + $0x38] sm:$0xf]
    %v676 = vld [vmem:[#allocation7 + $0x3c] sm:$0xf]
    %v677 = vld [vmem:[%s4] sm:$0x1]
    %v679 = vlaneseq
    %v680 = vshrl.u32 %v679, 7
    %v681 = vsub.s32 0, %v680
    %v682 = vrot.slane %v677, %v681
    %v700 = vunpack.c.l.b16 %v661
    %v701 = vunpack.c.l.b16 %v662
    %v702 = vunpack.c.l.b16 %v663
    %v703 = vunpack.c.l.b16 %v664
    %v704 = vunpack.c.l.b16 %v665
    %v705 = vunpack.c.l.b16 %v666
    %v706 = vunpack.c.l.b16 %v667
    %v707 = vunpack.c.l.b16 %v668
    %v708 = vunpack.c.l.b16 %v669
    %v709 = vunpack.c.l.b16 %v670
    %v710 = vunpack.c.l.b16 %v671
    %v711 = vunpack.c.l.b16 %v672
    %v712 = vunpack.c.l.b16 %v673
    %v713 = vunpack.c.l.b16 %v674
    %v714 = vunpack.c.l.b16 %v675
    %v715 = vunpack.c.l.b16 %v676
    %v716 = vpack.c.b16 %v701, %v700
    %v717 = vpack.c.b16 %v703, %v702
    %v718 = vpack.c.b16 %v705, %v704
    %v719 = vpack.c.b16 %v707, %v706
    %v720 = vpack.c.b16 %v709, %v708
    %v721 = vpack.c.b16 %v711, %v710
    %v722 = vpack.c.b16 %v713, %v712
    %v723 = vpack.c.b16 %v715, %v714
    %732 = vmatprep.subr.bf16.mxu0 0
    %733 = vmatpush1.bf16.msra.mxu0 %v716
    %734 = vmatprep.subr.bf16.mxu0 0
    %735 = vmatpush1.bf16.msra.mxu0 %v717
    %736 = vmatprep.subr.bf16.mxu0 0
    %737 = vmatpush1.bf16.msra.mxu0 %v718
    %738 = vmatprep.subr.bf16.mxu0 0
    %739 = vmatpush1.bf16.msra.mxu0 %v719
    %740 = vmatprep.subr.bf16.mxu0 0
    %741 = vmatpush1.bf16.msra.mxu0 %v720
    %742 = vmatprep.subr.bf16.mxu0 0
    %743 = vmatpush1.bf16.msra.mxu0 %v721
    %744 = vmatprep.subr.bf16.mxu0 0
    %745 = vmatpush1.bf16.msra.mxu0 %v722
    %746 = vmatprep.subr.bf16.mxu0 0
    %747 = vmatpush1.bf16.msra.mxu0 %v723
    %748 = vmatprep.subr.bf16.mxu0 0
    %749 = vmatpush1.bf16.msra.mxu0 0
    %750 = vmatprep.subr.bf16.mxu0 0
    %751 = vmatpush1.bf16.msra.mxu0 0
    %752 = vmatprep.subr.bf16.mxu0 0
    %753 = vmatpush1.bf16.msra.mxu0 0
    %754 = vmatprep.subr.bf16.mxu0 0
    %755 = vmatpush1.bf16.msra.mxu0 0
    %756 = vmatprep.subr.bf16.mxu0 0
    %757 = vmatpush1.bf16.msra.mxu0 0
    %758 = vmatprep.subr.bf16.mxu0 0
    %759 = vmatpush1.bf16.msra.mxu0 0
    %760 = vmatprep.subr.bf16.mxu0 0
    %761 = vmatpush1.bf16.msra.mxu0 0
    %762 = vmatprep.subr.bf16.mxu0 0
    %763 = vmatpush1.bf16.msra.mxu0 0
    %764 = vmatprep.mubr.bf16.mxu0 0
    %765 = vmatmul.mubr.bf16.gmra.mrb[0].mxu0 %v660
    %v766 = vpop.f32.mrb[0].mxu0
    %v767 = vadd.f32 %v682, %v766
    %v768 = vpop.f32.mrb[0].mxu0
    %v769 = vpop.f32.mrb[0].mxu0
    %v770 = vadd.f32 %v682, %v769
    %v771 = vpop.f32.mrb[0].mxu0
    %772 = vdwg.mxu0
    %773 = vst [vmem:[#allocation8] sm:$0xff] %v767
    %774 = vst [vmem:[#allocation8 + $0x8] sm:$0xff] %v770
    // Predicated region
    $region34: #{tpu_custom_call.1} parent=1 // pred_check
      _
    $region35: #{tpu_custom_call.1} parent=1 // pred_check_branch
      %776 = sbr.rel (0) target = $region37
    $region36: #{tpu_custom_call.1} parent=1 // pred_region
      %s778 = ssub.s32 256, 256
      %779 = vsyncadd [#allocation4], %s778
      %s780 = sshll.u32 [#allocation8], 4
      %s781 = int_to_ptr.vmem [resolvable:$true] %s780
      %786 = dma.vmem_to_hbm [thread:$0]  %s781, 256, %s5, [#allocation4], 128, 128, 8
    $region37: #{tpu_custom_call.1} parent=1 // pred_fallthru
      _
    // Predicated region
    $region38: #{tpu_custom_call.1} parent=1 // pred_check
      _
    $region39: #{tpu_custom_call.1} parent=1 // pred_check_branch
      %788 = sbr.rel (0) target = $region41
    $region40: #{tpu_custom_call.1} parent=1 // pred_region
      %789 = dma.done [#allocation4], 256
    $region41: #{tpu_custom_call.1} parent=1 // pred_fallthru
      _
    %790 = vsyncpa [#allocation3], 1
    %791 = vsyncpa [#allocation6], 1
    %792 = vsyncpa [#allocation4], 1

</llo_original>
